<compile_context>
chip_gen: v7x
topology: tpu7x:2x2x1
jax: 0.10.0
libtpu: 0.0.40
codegen_flags: <defaults>
</compile_context>

<pallas_src>
import numpy as np
import jax
import jax.numpy as jnp
from jax.experimental import pallas as pl
from jax.experimental.pallas import tpu as pltpu


def _round_up(x, m):
    return ((x + m - 1) // m) * m


# ----------------------------- Pallas kernel --------------------------------

def _pairwise_dist_kernel(xa_ref, yat_ref, p_ref):
    # xa_ref : (N, DP)  augmented gts rows   [x, ||x||^2, 1, 0...]
    # yat_ref: (DP, NJ) augmented preds, pre-transposed in the wrapper
    #                   columns are [-2y, 1, ||y||^2, 0...]^T (zeros past N)
    # p_ref  : (N, NJ)  lane-dense output slab (NJ multiple of 128)
    # One plain MXU matmul per grid step; no in-kernel concat/relayout and no
    # masked lane stores.
    p_ref[...] = jnp.dot(xa_ref[...], yat_ref[...],
                         preferred_element_type=jnp.float32)


def batch_pairwise_dist(gts, preds):
    """P[b, i, j] = ||gts[b, i] - preds[b, j]||^2 (expanded form, like the
    PyTorch reference's rx + ry - 2*zz), computed on-TPU via Pallas."""
    B, N, D = gts.shape
    DP = max(16, _round_up(D + 2, 8))      # lane-aligned augmented feature width
    NJ = _round_up(N, 128)                 # lane-dense output column width

    x = gts.astype(jnp.float32)
    y = preds.astype(jnp.float32)
    xx = jnp.sum(x * x, axis=-1, keepdims=True)            # (B, N, 1)
    yy = jnp.sum(y * y, axis=-1, keepdims=True)            # (B, N, 1)
    ones = jnp.ones_like(xx)

    # Augmented operands built in the wrapper (NOT in the kernel body) so they
    # arrive via the BlockSpec DMA already laid out; zero padding keeps the
    # matmul result bit-identical for the first N output columns.
    xa = jnp.concatenate([x, xx, ones], axis=-1)            # (B, N, D+2)
    xa = jnp.pad(xa, ((0, 0), (0, 0), (0, DP - (D + 2))))   # (B, N, DP)
    ya = jnp.concatenate([-2.0 * y, ones, yy], axis=-1)     # (B, N, D+2)
    ya = jnp.pad(ya, ((0, 0), (0, NJ - N), (0, DP - (D + 2))))  # (B, NJ, DP)
    yat = jnp.swapaxes(ya, 1, 2)                            # (B, DP, NJ)

    # Double-buffered in/out block footprint with headroom; 16 MiB floor keeps
    # this within every generation's scoped-VMEM default (v5e 16 / v6e 32 /
    # v7x 32 MiB) and well under v7x's 64 MiB physical VMEM.
    block_bytes = 4 * (N * DP + DP * NJ + N * NJ)
    vmem_limit = int(min(64 << 20, max(16 << 20, 4 * block_bytes + (2 << 20))))

    p_pad = pl.pallas_call(
        _pairwise_dist_kernel,
        out_shape=jax.ShapeDtypeStruct((B, N, NJ), jnp.float32),
        grid_spec=pltpu.PrefetchScalarGridSpec(
            num_scalar_prefetch=0,
            grid=(B,),                         # >=2 parallel steps for v7x megacore
            in_specs=[
                pl.BlockSpec((None, N, DP), lambda b: (b, 0, 0)),    # xa
                pl.BlockSpec((None, DP, NJ), lambda b: (b, 0, 0)),   # yat
            ],
            out_specs=pl.BlockSpec((None, N, NJ), lambda b: (b, 0, 0)),
        ),
        compiler_params=pltpu.CompilerParams(
            dimension_semantics=("parallel",),
            vmem_limit_bytes=vmem_limit),
    )(xa, yat)

    return p_pad[:, :, :N]                     # drop lane padding columns


# --------------------- Host-side Hungarian assignment -----------------------

def linear_sum_assignment_np(cost):
    """Square-cost Hungarian (Jonker-Volgenant), numpy-vectorized inner loop."""
    cost = np.asarray(cost, dtype=np.float64)
    n, m = cost.shape
    assert n == m, "this loss only ever builds square cost matrices"
    INF = np.inf
    u = np.zeros(n + 1)
    v = np.zeros(m + 1)
    p = np.zeros(m + 1, dtype=np.int64)        # p[j] = row assigned to column j
    way = np.zeros(m + 1, dtype=np.int64)
    for i in range(1, n + 1):
        p[0] = i
        j0 = 0
        minv = np.full(m + 1, INF)
        used = np.zeros(m + 1, dtype=bool)
        while True:
            used[j0] = True
            i0 = int(p[j0])
            free = ~used
            free[0] = False
            # Reduced costs for all free columns at once (vectorized over j).
            cand = np.full(m + 1, INF)
            cand[1:] = cost[i0 - 1, :] - u[i0] - v[1:]
            improve = free & (cand < minv)
            minv = np.where(improve, cand, minv)
            way = np.where(improve, j0, way)
            masked = np.where(free, minv, INF)
            j1 = int(np.argmin(masked))
            delta = masked[j1]
            # Dual updates (vectorized); p[used] are distinct rows.
            u[p[used]] += delta
            v[used] -= delta
            minv[~used] -= delta
            j0 = j1
            if p[j0] == 0:
                break
        # Augmenting path.
        while True:
            j1 = int(way[j0])
            p[j0] = p[j1]
            j0 = j1
            if j0 == 0:
                break
    pairs = sorted((int(p[j]) - 1, j - 1) for j in range(1, m + 1))
    row_ind = np.array([r for r, _ in pairs], dtype=np.int64)
    col_ind = np.array([c for _, c in pairs], dtype=np.int64)
    return row_ind, col_ind


# ------------------------------- HungarianLoss ------------------------------

def hungarian_loss(preds, gts, counts):
    """Mirrors HungarianLoss.forward: mean over optimally-matched sq. dists."""
    # Hot path (pairwise squared distances) on TPU via the Pallas kernel.
    P_all = batch_pairwise_dist(gts, preds)                 # (B, N, N) on device

    # Single device->host transfer; everything below is host-side numpy.
    P_host = np.asarray(jax.device_get(P_all))
    counts_host = np.asarray(jax.device_get(counts))

    matched = []
    for b in range(P_host.shape[0]):
        c = int(counts_host[b])
        if c == 0:
            continue
        cost = P_host[b, :c, :c]
        row_ind, col_ind = linear_sum_assignment_np(cost)
        matched.append(P_host[b, row_ind, col_ind])         # vectorized gather
    matched = np.concatenate(matched).astype(np.float32)

    # Final reduction on host (no extra device round-trip for a tiny mean).
    return np.float32(matched.mean())


# ----------------------------------- main ------------------------------------

if __name__ == "__main__":
    B, N, D = 2, 16, 8     # small shapes: batch=2, up-to-16 points, dim=8
    key = jax.random.PRNGKey(0)
    k1, k2 = jax.random.split(key)
    preds = jax.random.normal(k1, (B, N, D), dtype=jnp.float32)
    gts = jax.random.normal(k2, (B, N, D), dtype=jnp.float32)
    counts = jnp.array([12, 16], dtype=jnp.int32)  # valid points per batch

    loss = hungarian_loss(preds, gts, counts)
    jax.block_until_ready(loss)
    assert np.isfinite(loss)
    print("KERNEL_OK")
</pallas_src>

<mosaic_0001>
module attributes {stable_mosaic.version = 11 : i64} {
  func.func @_pairwise_dist_kernel(%arg0: i32, %arg1: memref<1x16x16xf32, #tpu.memory_space<vmem>>, %arg2: memref<1x16x128xf32, #tpu.memory_space<vmem>>, %arg3: memref<1x16x128xf32, #tpu.memory_space<vmem>>) attributes {dimension_semantics = [#tpu.dimension_semantics<parallel>], iteration_bounds = array<i64: 2>, scalar_prefetch = 0 : i64, scratch_operands = 0 : i64, tpu.core_type = #tpu.core_type<tc>, window_params = [{transform_indices = @transform_0, window_bounds = array<i64: 1, 16, 16>}, {transform_indices = @transform_1, window_bounds = array<i64: 1, 16, 128>}, {transform_indices = @transform_2, window_bounds = array<i64: 1, 16, 128>}]} {
    %c0 = arith.constant 0 : index
    %c0_0 = arith.constant 0 : index
    %c0_1 = arith.constant 0 : index
    %0 = vector.load %arg1[%c0, %c0_0, %c0_1] : memref<1x16x16xf32, #tpu.memory_space<vmem>>, vector<1x16x16xf32>
    %1 = vector.shape_cast %0 : vector<1x16x16xf32> to vector<16x16xf32>
    %c0_2 = arith.constant 0 : index
    %c0_3 = arith.constant 0 : index
    %c0_4 = arith.constant 0 : index
    %2 = vector.load %arg2[%c0_2, %c0_3, %c0_4] : memref<1x16x128xf32, #tpu.memory_space<vmem>>, vector<1x16x128xf32>
    %3 = vector.shape_cast %2 : vector<1x16x128xf32> to vector<16x128xf32>
    %cst = arith.constant dense<0.000000e+00> : vector<16x128xf32>
    %4 = tpu.matmul %1, %3, %cst {dimension_numbers = #tpu.dot_dimension_numbers<[1], [0], [0], [1], [0, 0, 1, 1], [], []>} : vector<16x16xf32>, vector<16x128xf32>, vector<16x128xf32> -> vector<16x128xf32>
    %c0_5 = arith.constant 0 : index
    %c0_6 = arith.constant 0 : index
    %c0_7 = arith.constant 0 : index
    %5 = vector.load %arg3[%c0_5, %c0_6, %c0_7] : memref<1x16x128xf32, #tpu.memory_space<vmem>>, vector<1x16x128xf32>
    %6 = vector.shape_cast %5 : vector<1x16x128xf32> to vector<16x128xf32>
    %7 = vector.shape_cast %4 : vector<16x128xf32> to vector<1x16x128xf32>
    tpu.vector_store %arg3[%c0_5, %c0_6, %c0_7], %7 {strides = array<i32>} : memref<1x16x128xf32, #tpu.memory_space<vmem>>, vector<1x16x128xf32>,
    return
  }
  func.func @transform_0(%arg0: i32) -> (i32, i32, i32) {
    %c0_i32 = arith.constant 0 : i32
    %c0_i32_0 = arith.constant 0 : i32
    %c0_i32_1 = arith.constant 0 : i32
    return %arg0, %c0_i32, %c0_i32_0 : i32, i32, i32
  }
  func.func @transform_1(%arg0: i32) -> (i32, i32, i32) {
    %c0_i32 = arith.constant 0 : i32
    %c0_i32_0 = arith.constant 0 : i32
    %c0_i32_1 = arith.constant 0 : i32
    return %arg0, %c0_i32, %c0_i32_0 : i32, i32, i32
  }
  func.func @transform_2(%arg0: i32) -> (i32, i32, i32) {
    %c0_i32 = arith.constant 0 : i32
    %c0_i32_0 = arith.constant 0 : i32
    %c0_i32_1 = arith.constant 0 : i32
    return %arg0, %c0_i32, %c0_i32_0 : i32, i32, i32
  }
}

</mosaic_0001>

<llo_original>
// kernel: tpu_custom_call.1
$region0: #{tpu_custom_call.1}
  #allocation0 [shape = 'u32[]', space=smem, size = 0x4, offset = 0x4, fixed_abs, tag = 'smem constant byte address 0x4 - core index']
  #allocation1 [shape = 'u32[144,128]{1,0:T(1,128)}', space=vmem, size = 0x12000, scoped, tag = 'internal scratch']
  %s0 = inlined_call_operand.hbm [shape: f32[2,16,16], index: 0, kind: input, shape index: {}]
  %s1 = inlined_call_operand.hbm [shape: f32[2,16,128], index: 1, kind: input, shape index: {}]
  %s2 = inlined_call_operand.hbm [shape: f32[2,16,128], index: 2, kind: output, shape index: {}]
  %s3 = sld [smem:[#allocation0]]
  $region49: #{tpu_custom_call.1} parent=0
    _
  %s5 = ssub.s32 1, %s3
  %s6 = scalar_select 0, %s5, %s3
  $region1: #{tpu_custom_call.1} parent=0
    #allocation2 [shape = 'u8[16384]{0}', space=vmem, size = 0x4000, scoped, tag = 'input window, operand 0']
    #allocation3 [shape = 's32[2]{0}', space=sflag, size = 0x8, scoped, tag = 'scoped memory for tpu_custom_call.1']
    #allocation4 [shape = 's32[2]{0}', space=sflag, size = 0x8, scoped, tag = 'scoped memory for tpu_custom_call.1']
    #allocation5 [shape = 'u8[16384]{0}', space=vmem, size = 0x4000, scoped, tag = 'input window, operand 1']
    #allocation6 [shape = 's32[2]{0}', space=sflag, size = 0x8, scoped, tag = 'scoped memory for tpu_custom_call.1']
    #allocation7 [shape = 'u8[16384]{0}', space=vmem, size = 0x4000, scoped, tag = 'output window, operand 0']
    %7 = vsyncpa [#allocation3], 0
    %s8 = scalar_lea.sflag [#allocation3], 1
    %9 = vsyncpa %s8, 0
    %10 = vsyncpa [#allocation6], 0
    %s11 = scalar_lea.sflag [#allocation6], 1
    %12 = vsyncpa %s11, 0
    %13 = vsyncpa [#allocation4], 0
    %s14 = scalar_lea.sflag [#allocation4], 1
    %15 = vsyncpa %s14, 0
    loop: start=0, step=1, limit=4
    $region2: #{tpu_custom_call.1} parent=1 // loop_pre_header
      _
    $region3: #{tpu_custom_call.1} parent=1 // loop_header
      %s17 = sphi 0, %s21
      %p18 = scmp.ge.s32.totalorder %s17, 4
      %s27 = sphi 0, %s29
      %s30 = sphi 0, %s27
      %s31 = sphi 0, %s30
      %s47 = sphi 0, %s31
      %s53 = sphi 0, %s55
      %s56 = sphi 0, %s53
      %s57 = sphi 0, %s56
      %s73 = sphi 0, %s57
      %s79 = sphi 0, %s81
      %s82 = sphi 0, %s79
      %s83 = sphi 0, %s82
      %s99 = sphi 0, %s83
    $region4: #{tpu_custom_call.1} parent=1 // loop_header_branch
      %20 = sbr.rel (%p18) target = $region8
    $region5: #{tpu_custom_call.1} parent=1 // loop_body
      %s22 = ssub.s32 %s17, 1
      %s23 = ssub.s32 %s17, 2
      %s24 = sadd.s32 %s17, 1
      %s25 = ssub.s32 %s17, %s24
      %p26 = scmp.eq.s32.totalorder %s25, 0
      %s28 = sadd.s32 %s27, 1
      %s29 = scalar_select %p26, %s27, %s28
      %p32 = pneg %p26
      %p33 = scmp.eq.s32.totalorder %s17, 1
      %p34 = por %p32, %p33
      %p35 = scmp.ne.s32.totalorder %s27, %s30
      %p36 = scmp.eq.s32.totalorder %s17, 0
      %p37 = por %p35, %p36
      %p38 = scmp.ne.s32.totalorder %s27, %s30
      %p39 = scmp.eq.s32.totalorder %s22, 1
      %p40 = por %p38, %p39
      %p41 = scmp.ne.s32.totalorder %s30, %s31
      %p42 = scmp.eq.s32.totalorder %s22, 0
      %p43 = por %p41, %p42
      %p44 = scmp.ne.s32.totalorder %s30, %s31
      %p45 = scmp.eq.s32.totalorder %s23, 1
      %p46 = por %p44, %p45
      %p48 = scmp.ne.s32.totalorder %s31, %s47
      %p49 = scmp.eq.s32.totalorder %s23, 0
      %p50 = por %p48, %p49
      %s51 = ssub.s32 %s17, %s24
      %p52 = scmp.eq.s32.totalorder %s51, 0
      %s54 = sadd.s32 %s53, 1
      %s55 = scalar_select %p52, %s53, %s54
      %p58 = pneg %p52
      %p59 = scmp.eq.s32.totalorder %s17, 1
      %p60 = por %p58, %p59
      %p61 = scmp.ne.s32.totalorder %s53, %s56
      %p62 = scmp.eq.s32.totalorder %s17, 0
      %p63 = por %p61, %p62
      %p64 = scmp.ne.s32.totalorder %s53, %s56
      %p65 = scmp.eq.s32.totalorder %s22, 1
      %p66 = por %p64, %p65
      %p67 = scmp.ne.s32.totalorder %s56, %s57
      %p68 = scmp.eq.s32.totalorder %s22, 0
      %p69 = por %p67, %p68
      %p70 = scmp.ne.s32.totalorder %s56, %s57
      %p71 = scmp.eq.s32.totalorder %s23, 1
      %p72 = por %p70, %p71
      %p74 = scmp.ne.s32.totalorder %s57, %s73
      %p75 = scmp.eq.s32.totalorder %s23, 0
      %p76 = por %p74, %p75
      %s77 = ssub.s32 %s17, %s24
      %p78 = scmp.eq.s32.totalorder %s77, 0
      %s80 = sadd.s32 %s79, 1
      %s81 = scalar_select %p78, %s79, %s80
      %p84 = pneg %p78
      %p85 = scmp.eq.s32.totalorder %s17, 1
      %p86 = por %p84, %p85
      %p87 = scmp.ne.s32.totalorder %s79, %s82
      %p88 = scmp.eq.s32.totalorder %s17, 0
      %p89 = por %p87, %p88
      %p90 = scmp.ne.s32.totalorder %s79, %s82
      %p91 = scmp.eq.s32.totalorder %s22, 1
      %p92 = por %p90, %p91
      %p93 = scmp.ne.s32.totalorder %s82, %s83
      %p94 = scmp.eq.s32.totalorder %s22, 0
      %p95 = por %p93, %p94
      %p96 = scmp.ne.s32.totalorder %s82, %s83
      %p97 = scmp.eq.s32.totalorder %s23, 1
      %p98 = por %p96, %p97
      %p100 = scmp.ne.s32.totalorder %s83, %s99
      %p101 = scmp.eq.s32.totalorder %s23, 0
      %p102 = por %p100, %p101
      %p103 = scmp.le.s32.totalorder 1, %s17
      %p104 = scmp.lt.s32.totalorder %s17, 3
      %p105 = pnand %p103, %p104
      %p106 = pneg %p105
      // Predicated region
      $region9: #{tpu_custom_call.1} parent=5 // pred_check
        _
      $region10: #{tpu_custom_call.1} parent=5 // pred_check_branch
        %108 = sbr.rel (%p105) target = $region12
      $region11: #{tpu_custom_call.1} parent=5 // pred_region
        %s109 = ssub.s32 %s17, 1
      $region12: #{tpu_custom_call.1} parent=5 // pred_fallthru
        _
      %p110 = scmp.lt.s32.totalorder %s17, 2
      // Predicated region
      $region13: #{tpu_custom_call.1} parent=5 // pred_check
        %p111 = pneg %p110
      $region14: #{tpu_custom_call.1} parent=5 // pred_check_branch
        %113 = sbr.rel (%p111) target = $region16
      $region15: #{tpu_custom_call.1} parent=5 // pred_region
        // Predicated region
        $region17: #{tpu_custom_call.1} parent=15 // pred_check
          %p114 = pneg %p37
        $region18: #{tpu_custom_call.1} parent=15 // pred_check_branch
          %116 = sbr.rel (%p114) target = $region20
        $region19: #{tpu_custom_call.1} parent=15 // pred_region
          %s117 = sand.u32 %s27, 1
          %s118 = scalar_lea.sflag [#allocation3], %s117
          %s119 = sand.u32 %s27, 1
          %s120 = smul.addr %s119, 16
          %s121 = scalar_lea.vmem [#allocation2], %s120
          %s123 = ssub.s32 256, 256
          %124 = vsyncadd %s118, %s123
          %s125 = smul.addr %s17, 2
          %s126 = smul.addr %s125, 128
          %s127 = scalar_lea.hbm %s0, %s126
          %s128 = sshll.u32 %s121, 4
          %s129 = int_to_ptr.vmem [resolvable:$true] %s128
          %134 = dma.hbm_to_vmem [thread:$0]  %s127, 256, %s129, %s118, 128, 128, 8
        $region20: #{tpu_custom_call.1} parent=15 // pred_fallthru
          _
        // Predicated region
        $region21: #{tpu_custom_call.1} parent=15 // pred_check
          %p135 = pneg %p63
        $region22: #{tpu_custom_call.1} parent=15 // pred_check_branch
          %137 = sbr.rel (%p135) target = $region24
        $region23: #{tpu_custom_call.1} parent=15 // pred_region
          %s138 = sand.u32 %s53, 1
          %s139 = scalar_lea.sflag [#allocation6], %s138
          %s140 = sand.u32 %s53, 1
          %s141 = smul.addr %s140, 16
          %s142 = scalar_lea.vmem [#allocation5], %s141
          %s144 = ssub.s32 256, 256
          %145 = vsyncadd %s139, %s144
          %s146 = smul.addr %s17, 2
          %s147 = smul.addr %s146, 128
          %s148 = scalar_lea.hbm %s1, %s147
          %s149 = sshll.u32 %s142, 4
          %s150 = int_to_ptr.vmem [resolvable:$true] %s149
          %155 = dma.hbm_to_vmem [thread:$0]  %s148, 256, %s150, %s139, 128, 128, 8
        $region24: #{tpu_custom_call.1} parent=15 // pred_fallthru
          _
      $region16: #{tpu_custom_call.1} parent=5 // pred_fallthru
        _
      %p156 = scmp.le.s32.totalorder 1, %s17
      %p157 = scmp.lt.s32.totalorder %s17, 3
      %p158 = pnand %p156, %p157
      %p159 = pneg %p158
      // Predicated region
      $region25: #{tpu_custom_call.1} parent=5 // pred_check
        _
      $region26: #{tpu_custom_call.1} parent=5 // pred_check_branch
        %161 = sbr.rel (%p158) target = $region28
      $region27: #{tpu_custom_call.1} parent=5 // pred_region
        %s162 = ssub.s32 %s17, 1
        %s163 = sand.u32 %s30, 1
        %s164 = scalar_lea.sflag [#allocation3], %s163
        %s165 = sand.u32 %s30, 1
        %s166 = smul.addr %s165, 16
        %s167 = scalar_lea.vmem [#allocation2], %s166
        // Predicated region
        $region29: #{tpu_custom_call.1} parent=27 // pred_check
          %p168 = pneg %p43
        $region30: #{tpu_custom_call.1} parent=27 // pred_check_branch
          %170 = sbr.rel (%p168) target = $region32
        $region31: #{tpu_custom_call.1} parent=27 // pred_region
          %171 = dma.done %s164, 256
        $region32: #{tpu_custom_call.1} parent=27 // pred_fallthru
          _
        %s172 = sand.u32 %s56, 1
        %s173 = scalar_lea.sflag [#allocation6], %s172
        %s174 = sand.u32 %s56, 1
        %s175 = smul.addr %s174, 16
        %s176 = scalar_lea.vmem [#allocation5], %s175
        // Predicated region
        $region33: #{tpu_custom_call.1} parent=27 // pred_check
          %p177 = pneg %p69
        $region34: #{tpu_custom_call.1} parent=27 // pred_check_branch
          %179 = sbr.rel (%p177) target = $region36
        $region35: #{tpu_custom_call.1} parent=27 // pred_region
          %180 = dma.done %s173, 256
        $region36: #{tpu_custom_call.1} parent=27 // pred_fallthru
          _
        %s181 = sand.u32 %s30, 1
        %s182 = scalar_lea.sflag [#allocation3], %s181
        %s183 = sand.u32 %s30, 1
        %s184 = smul.addr %s183, 16
        %s185 = scalar_lea.vmem [#allocation2], %s184
        %p186 = pneg %p43
        %p187 = pneg %p40
        %s188 = sand.u32 %s56, 1
        %s189 = scalar_lea.sflag [#allocation6], %s188
        %s190 = sand.u32 %s56, 1
        %s191 = smul.addr %s190, 16
        %s192 = scalar_lea.vmem [#allocation5], %s191
        %p193 = pneg %p69
        %p194 = pneg %p66
        %p195 = pneg %p95
        %p196 = pneg %p92
        %s197 = sand.u32 %s82, 1
        %s198 = scalar_lea.sflag [#allocation4], %s197
        %s199 = sand.u32 %s82, 1
        %s200 = smul.addr %s199, 16
        %s201 = scalar_lea.vmem [#allocation7], %s200
        %v202 = vld [vmem:[%s167] sm:$0xff]
        %v203 = vld [vmem:[%s167 + $0x8] sm:$0xff]
        %v204 = vld [vmem:[%s176] sm:$0xff]
        %v205 = vld [vmem:[%s176 + $0x8] sm:$0xff]
        %vm206 = vcmask 130048
        %v208 = vsel %vm206, %v202, 0
        %v211 = vsel %vm206, %v203, 0
        %213 = vmatprep.subr.mxu0 0.0
        %214 = vmatpush1.msra.mxu0 %v204
        %215 = vmatprep.subr.mxu0 0.0
        %216 = vmatpush1.msra.mxu0 %v205
        %217 = vmatprep.subr.mxu0 0.0
        %218 = vmatpush1.msra.mxu0 0.0
        %219 = vmatprep.subr.mxu0 0.0
        %220 = vmatpush1.msra.mxu0 0.0
        %221 = vmatprep.subr.mxu0 0.0
        %222 = vmatpush1.msra.mxu0 0.0
        %223 = vmatprep.subr.mxu0 0.0
        %224 = vmatpush1.msra.mxu0 0.0
        %225 = vmatprep.subr.mxu0 0.0
        %226 = vmatpush1.msra.mxu0 0.0
        %227 = vmatprep.subr.mxu0 0.0
        %228 = vmatpush1.msra.mxu0 0.0
        %229 = vmatprep.subr.mxu0 0.0
        %230 = vmatpush1.msra.mxu0 0.0
        %231 = vmatprep.subr.mxu0 0.0
        %232 = vmatpush1.msra.mxu0 0.0
        %233 = vmatprep.subr.mxu0 0.0
        %234 = vmatpush1.msra.mxu0 0.0
        %235 = vmatprep.subr.mxu0 0.0
        %236 = vmatpush1.msra.mxu0 0.0
        %237 = vmatprep.subr.mxu0 0.0
        %238 = vmatpush1.msra.mxu0 0.0
        %239 = vmatprep.subr.mxu0 0.0
        %240 = vmatpush1.msra.mxu0 0.0
        %241 = vmatprep.subr.mxu0 0.0
        %242 = vmatpush1.msra.mxu0 0.0
        %243 = vmatprep.subr.mxu0 0.0
        %244 = vmatpush1.msra.mxu0 0.0
        %245 = vmatprep.subr.mxu0 0.0
        %246 = vmatpush1.msra.mxu0 0.0
        %247 = vmatprep.subr.mxu0 0.0
        %248 = vmatpush1.msra.mxu0 0.0
        %249 = vmatprep.subr.mxu0 0.0
        %250 = vmatpush1.msra.mxu0 0.0
        %251 = vmatprep.subr.mxu0 0.0
        %252 = vmatpush1.msra.mxu0 0.0
        %253 = vmatprep.subr.mxu0 0.0
        %254 = vmatpush1.msra.mxu0 0.0
        %255 = vmatprep.subr.mxu0 0.0
        %256 = vmatpush1.msra.mxu0 0.0
        %257 = vmatprep.subr.mxu0 0.0
        %258 = vmatpush1.msra.mxu0 0.0
        %259 = vmatprep.subr.mxu0 0.0
        %260 = vmatpush1.msra.mxu0 0.0
        %261 = vmatprep.subr.mxu0 0.0
        %262 = vmatpush1.msra.mxu0 0.0
        %263 = vmatprep.subr.mxu0 0.0
        %264 = vmatpush1.msra.mxu0 0.0
        %265 = vmatprep.subr.mxu0 0.0
        %266 = vmatpush1.msra.mxu0 0.0
        %267 = vmatprep.subr.mxu0 0.0
        %268 = vmatpush1.msra.mxu0 0.0
        %269 = vmatprep.subr.mxu0 0.0
        %270 = vmatpush1.msra.mxu0 0.0
        %271 = vmatprep.subr.mxu0 0.0
        %272 = vmatpush1.msra.mxu0 0.0
        %273 = vmatprep.subr.mxu0 0.0
        %274 = vmatpush1.msra.mxu0 0.0
        %275 = vmatprep.subr.mxu0 0.0
        %276 = vmatpush1.msra.mxu0 0.0
        %277 = vmatprep.mubr.f32.mxu0 0.0
        %278 = vmatmul.mubr.f32.gmra.mrb[0].mxu0 %v208
        %v279 = vpop.f32.mrb[0].mxu0
        %v280 = vadd.f32 0.0, %v279
        %v281 = vpop.f32.mrb[0].mxu0
        %282 = vmatprep.mubr.f32.mxu0 0.0
        %283 = vmatmul.mubr.f32.gmra.mrb[0].mxu0 %v211
        %v284 = vpop.f32.mrb[0].mxu0
        %v285 = vadd.f32 0.0, %v284
        %v286 = vpop.f32.mrb[0].mxu0
        %287 = vdwg.mxu0
        %288 = vst [vmem:[%s201] sm:$0xff] %v280
        %289 = vst [vmem:[%s201 + $0x8] sm:$0xff] %v285
        %s290 = sand.u32 %s82, 1
        %s291 = scalar_lea.sflag [#allocation4], %s290
        %s292 = sand.u32 %s82, 1
        %s293 = smul.addr %s292, 16
        %s294 = scalar_lea.vmem [#allocation7], %s293
        // Predicated region
        $region37: #{tpu_custom_call.1} parent=27 // pred_check
          %p295 = pneg %p92
        $region38: #{tpu_custom_call.1} parent=27 // pred_check_branch
          %297 = sbr.rel (%p295) target = $region40
        $region39: #{tpu_custom_call.1} parent=27 // pred_region
          %s299 = ssub.s32 256, 256
          %300 = vsyncadd %s291, %s299
          %s301 = smul.addr %s22, 2
          %s302 = smul.addr %s301, 128
          %s303 = scalar_lea.hbm %s2, %s302
          %s304 = sshll.u32 %s294, 4
          %s305 = int_to_ptr.vmem [resolvable:$true] %s304
          %310 = dma.vmem_to_hbm [thread:$0]  %s305, 256, %s303, %s291, 128, 128, 8
        $region40: #{tpu_custom_call.1} parent=27 // pred_fallthru
          _
      $region28: #{tpu_custom_call.1} parent=5 // pred_fallthru
        _
      %p311 = scmp.le.s32.totalorder 2, %s17
      // Predicated region
      $region41: #{tpu_custom_call.1} parent=5 // pred_check
        %p312 = pneg %p311
      $region42: #{tpu_custom_call.1} parent=5 // pred_check_branch
        %314 = sbr.rel (%p312) target = $region44
      $region43: #{tpu_custom_call.1} parent=5 // pred_region
        %s315 = ssub.s32 %s17, 2
        // Predicated region
        $region45: #{tpu_custom_call.1} parent=43 // pred_check
          %p316 = pneg %p98
        $region46: #{tpu_custom_call.1} parent=43 // pred_check_branch
          %318 = sbr.rel (%p316) target = $region48
        $region47: #{tpu_custom_call.1} parent=43 // pred_region
          %s319 = sand.u32 %s83, 1
          %s320 = scalar_lea.sflag [#allocation4], %s319
          %s321 = sand.u32 %s83, 1
          %s322 = smul.addr %s321, 16
          %s323 = scalar_lea.vmem [#allocation7], %s322
          %324 = dma.done %s320, 256
        $region48: #{tpu_custom_call.1} parent=43 // pred_fallthru
          _
      $region44: #{tpu_custom_call.1} parent=5 // pred_fallthru
        _
    $region6: #{tpu_custom_call.1} parent=1 // loop_footer
      %s21 = sadd.s32 1, %s17
    $region7: #{tpu_custom_call.1} parent=1 // loop_footer_branch
      %16 = sbr.rel target = $region3
    $region8: #{tpu_custom_call.1} parent=1 // loop_exit
      _
    %325 = vsyncpa [#allocation3], 1
    %s326 = scalar_lea.sflag [#allocation3], 1
    %327 = vsyncpa %s326, 1
    %328 = vsyncpa [#allocation6], 1
    %s329 = scalar_lea.sflag [#allocation6], 1
    %330 = vsyncpa %s329, 1
    %331 = vsyncpa [#allocation4], 1
    %s332 = scalar_lea.sflag [#allocation4], 1
    %333 = vsyncpa %s332, 1

</llo_original>
